<compile_context>
chip_gen: v6e
topology: v6e:2x2x1
jax: 0.10.0
libtpu: 0.0.40
codegen_flags: <defaults>
</compile_context>

<pallas_src>
import functools
import itertools
import math

import jax
import jax.numpy as jnp
from jax.experimental import pallas as pl
from jax.experimental.pallas import tpu as pltpu

# ----------------------------- configuration --------------------------------
IN_CH = 3
NUM_CLASSES = 1
DIMS = [96, 192, 384, 768]          # VSSM stage dims (module default)
DEPTHS = [2, 2, 9, 2]               # encoder depths
DEPTHS_DEC = [2, 9, 2, 2]           # decoder depths
D_STATE = 16
DCA_P = 2                           # DCA token grid (P x P tokens per scale)
SPATIAL_HEADS = [4, 4, 4, 4]
CHANNEL_HEADS = [1, 1, 1, 1]


# -------------------- generation-aware tiling parameters ---------------------
def _detect_vmem_bytes():
    try:
        info = pltpu.get_tpu_info()
        for attr in ("vmem_capacity_bytes", "vmem_bytes", "vmem_size_bytes"):
            v = getattr(info, attr, None)
            if v:
                return int(v)
    except Exception:
        pass
    return 64 * 1024 * 1024          # conservative (v7x-sized) default


_VMEM_PHYS = _detect_vmem_bytes()
if _VMEM_PHYS >= 100 * 1024 * 1024:   # v5e / v6e: 128 MiB physical VMEM
    _VMEM_LIMIT = 100 * 1024 * 1024
    _ROW_CAP = 1024
else:                                 # v7x: 64 MiB per TensorCore
    _VMEM_LIMIT = 48 * 1024 * 1024
    _ROW_CAP = 512

_CP1 = pltpu.CompilerParams(dimension_semantics=("parallel",),
                            vmem_limit_bytes=_VMEM_LIMIT)
_CP2 = pltpu.CompilerParams(dimension_semantics=("parallel", "parallel"),
                            vmem_limit_bytes=_VMEM_LIMIT)
_CP_SCAN = pltpu.CompilerParams(
    dimension_semantics=("parallel", "parallel", "arbitrary"),
    vmem_limit_bytes=_VMEM_LIMIT)


def _sigmoid(x):
    # tanh-based: numerically stable, no inf intermediate (EUP tanh).
    return 0.5 * jnp.tanh(0.5 * x) + 0.5


def _softplus(x):
    # stable softplus with only exp/log/abs/max (all supported in Mosaic).
    return jnp.maximum(x, 0.0) + jnp.log(1.0 + jnp.exp(-jnp.abs(x)))


def _tile_rows(M, cap=None):
    """Row tile: largest power-of-two divisor of M, capped so that bigger
    kernels get >= 8 grid steps (DMA overlap / megacore sharding)."""
    if cap is None:
        cap = _ROW_CAP
    cap_eff = max(8, min(cap, max(M // 8, 128)))
    t = 8
    while t * 2 <= cap_eff and M % (t * 2) == 0:
        t *= 2
    if M % t == 0:
        return t, M, False
    Mp = ((M + t - 1) // t) * t
    return t, Mp, True


def _choose_chunk(L):
    """L-chunk length for the selective scan (divides L, <= 64, mult of 8)."""
    if L <= 64:
        return L
    for c in (64, 56, 48, 40, 32, 24, 16, 8):
        if L % c == 0:
            return c
    return L


# ============================ Pallas kernels =================================
# ---- plain matmul + bias (+ optional fused activation), bf16 MXU ------------
def _mm_kernel(x_ref, w_ref, b_ref, o_ref, *, act):
    x = x_ref[...].astype(jnp.bfloat16)
    w = w_ref[...].astype(jnp.bfloat16)
    acc = jnp.dot(x, w, preferred_element_type=jnp.float32) + b_ref[...]
    if act == "silu":
        acc = acc * _sigmoid(acc)
    elif act == "sigmoid":
        acc = _sigmoid(acc)
    o_ref[...] = acc


@functools.partial(jax.jit, static_argnames=("act",))
def matmul_bias(x, w, b, act=None):
    M, K = x.shape
    N = w.shape[1]
    tm, Mp, pad = _tile_rows(M)
    xp = jnp.pad(x, ((0, Mp - M), (0, 0))) if pad else x
    out = pl.pallas_call(
        functools.partial(_mm_kernel, act=act),
        grid=(Mp // tm,),
        in_specs=[pl.BlockSpec((tm, K), lambda i: (i, 0)),
                  pl.BlockSpec((K, N), lambda i: (0, 0)),
                  pl.BlockSpec((1, N), lambda i: (0, 0))],
        out_specs=pl.BlockSpec((tm, N), lambda i: (i, 0)),
        out_shape=jax.ShapeDtypeStruct((Mp, N), jnp.float32),
        compiler_params=_CP1,
    )(xp, w, b.reshape(1, N))
    return out[:M] if pad else out


# ---- fused LayerNorm -> matmul + bias (+ optional activation) ---------------
def _ln_mm_kernel(x_ref, g_ref, bln_ref, w_ref, b_ref, o_ref, *, act, k_true):
    x = x_ref[...]
    if k_true is None:
        mu = jnp.mean(x, axis=-1, keepdims=True)
        xc = x - mu
        var = jnp.mean(xc * xc, axis=-1, keepdims=True)
    else:
        # input is zero-padded beyond k_true lanes -> sums only see real lanes.
        inv = 1.0 / float(k_true)
        mu = jnp.sum(x, axis=-1, keepdims=True) * inv
        var = jnp.sum(x * x, axis=-1, keepdims=True) * inv - mu * mu
        xc = x - mu
    xn = xc * jax.lax.rsqrt(var + 1e-5) * g_ref[...] + bln_ref[...]
    acc = jnp.dot(xn.astype(jnp.bfloat16), w_ref[...].astype(jnp.bfloat16),
                  preferred_element_type=jnp.float32) + b_ref[...]
    if act == "silu":
        acc = acc * _sigmoid(acc)
    elif act == "sigmoid":
        acc = _sigmoid(acc)
    o_ref[...] = acc


@functools.partial(jax.jit, static_argnames=("act", "k_true"))
def ln_matmul(x, g, bln, w, b, act=None, k_true=None):
    M, K = x.shape
    N = w.shape[1]
    tm, Mp, pad = _tile_rows(M)
    xp = jnp.pad(x, ((0, Mp - M), (0, 0))) if pad else x
    out = pl.pallas_call(
        functools.partial(_ln_mm_kernel, act=act, k_true=k_true),
        grid=(Mp // tm,),
        in_specs=[pl.BlockSpec((tm, K), lambda i: (i, 0)),
                  pl.BlockSpec((1, K), lambda i: (0, 0)),
                  pl.BlockSpec((1, K), lambda i: (0, 0)),
                  pl.BlockSpec((K, N), lambda i: (0, 0)),
                  pl.BlockSpec((1, N), lambda i: (0, 0))],
        out_specs=pl.BlockSpec((tm, N), lambda i: (i, 0)),
        out_shape=jax.ShapeDtypeStruct((Mp, N), jnp.float32),
        compiler_params=_CP1,
    )(xp, g.reshape(1, K), bln.reshape(1, K), w, b.reshape(1, N))
    return out[:M] if pad else out


# ---- fused out_norm -> SiLU gate -> out_proj -> + residual ------------------
def _ln_gate_mm_res_kernel(y_ref, z_ref, r_ref, g_ref, bln_ref, w_ref, b_ref,
                           o_ref):
    y = y_ref[...]
    mu = jnp.mean(y, axis=-1, keepdims=True)
    yc = y - mu
    var = jnp.mean(yc * yc, axis=-1, keepdims=True)
    yn = yc * jax.lax.rsqrt(var + 1e-5) * g_ref[...] + bln_ref[...]
    z = z_ref[...]
    gated = yn * (z * _sigmoid(z))
    acc = jnp.dot(gated.astype(jnp.bfloat16), w_ref[...].astype(jnp.bfloat16),
                  preferred_element_type=jnp.float32)
    o_ref[...] = acc + b_ref[...] + r_ref[...]


@jax.jit
def ln_gate_matmul_res(y, z, resid, g, bln, w, b):
    M, K = y.shape
    N = w.shape[1]
    tm, Mp, pad = _tile_rows(M)
    if pad:
        y = jnp.pad(y, ((0, Mp - M), (0, 0)))
        z = jnp.pad(z, ((0, Mp - M), (0, 0)))
        resid = jnp.pad(resid, ((0, Mp - M), (0, 0)))
    out = pl.pallas_call(
        _ln_gate_mm_res_kernel,
        grid=(Mp // tm,),
        in_specs=[pl.BlockSpec((tm, K), lambda i: (i, 0)),
                  pl.BlockSpec((tm, K), lambda i: (i, 0)),
                  pl.BlockSpec((tm, N), lambda i: (i, 0)),
                  pl.BlockSpec((1, K), lambda i: (0, 0)),
                  pl.BlockSpec((1, K), lambda i: (0, 0)),
                  pl.BlockSpec((K, N), lambda i: (0, 0)),
                  pl.BlockSpec((1, N), lambda i: (0, 0))],
        out_specs=pl.BlockSpec((tm, N), lambda i: (i, 0)),
        out_shape=jax.ShapeDtypeStruct((Mp, N), jnp.float32),
        compiler_params=_CP1,
    )(y, z, resid, g.reshape(1, K), bln.reshape(1, K), w, b.reshape(1, N))
    return out[:M] if pad else out


# ---- batched 4-direction matmul (folded x_proj + dt_proj) -------------------
def _bmm_kernel(x_ref, w_ref, b_ref, o_ref):
    x = x_ref[...].astype(jnp.bfloat16)
    acc = jnp.dot(x, w_ref[...].astype(jnp.bfloat16),
                  preferred_element_type=jnp.float32)
    o_ref[...] = acc + b_ref[...]


@jax.jit
def matmul_bias_dirs(x, w, b):
    # x: (4, M, K) ; w: (4, K, N) ; b: (4, N)
    Kd, M, K = x.shape
    N = w.shape[2]
    tm, Mp, pad = _tile_rows(M)
    xp = jnp.pad(x, ((0, 0), (0, Mp - M), (0, 0))) if pad else x
    out = pl.pallas_call(
        _bmm_kernel,
        grid=(Kd, Mp // tm),
        in_specs=[pl.BlockSpec((None, tm, K), lambda k, i: (k, i, 0)),
                  pl.BlockSpec((None, K, N), lambda k, i: (k, 0, 0)),
                  pl.BlockSpec((None, 1, N), lambda k, i: (k, 0, 0))],
        out_specs=pl.BlockSpec((None, tm, N), lambda k, i: (k, i, 0)),
        out_shape=jax.ShapeDtypeStruct((Kd, Mp, N), jnp.float32),
        compiler_params=_CP2,
    )(xp, w, b.reshape(Kd, 1, N))
    return out[:, :M] if pad else out


# ---- standalone LayerNorm ----------------------------------------------------
def _ln_kernel(x_ref, g_ref, b_ref, o_ref):
    x = x_ref[...]
    mu = jnp.mean(x, axis=-1, keepdims=True)
    xc = x - mu
    var = jnp.mean(xc * xc, axis=-1, keepdims=True)
    o_ref[...] = xc * jax.lax.rsqrt(var + 1e-5) * g_ref[...] + b_ref[...]


@jax.jit
def layer_norm(x, g, b):
    shp = x.shape
    C = shp[-1]
    x2 = x.reshape(-1, C)
    M = x2.shape[0]
    tm, Mp, pad = _tile_rows(M)
    xp = jnp.pad(x2, ((0, Mp - M), (0, 0))) if pad else x2
    out = pl.pallas_call(
        _ln_kernel,
        grid=(Mp // tm,),
        in_specs=[pl.BlockSpec((tm, C), lambda i: (i, 0)),
                  pl.BlockSpec((1, C), lambda i: (0, 0)),
                  pl.BlockSpec((1, C), lambda i: (0, 0))],
        out_specs=pl.BlockSpec((tm, C), lambda i: (i, 0)),
        out_shape=jax.ShapeDtypeStruct((Mp, C), jnp.float32),
        compiler_params=_CP1,
    )(xp, g.reshape(1, C), b.reshape(1, C))
    out = out[:M] if pad else out
    return out.reshape(shp)


# ---- depthwise 3x3 conv + SiLU ----------------------------------------------
def _dwconv_kernel(x_ref, w_ref, b_ref, o_ref):
    H = o_ref.shape[1]
    W = o_ref.shape[2]
    C = o_ref.shape[3]
    acc = jnp.zeros((H, W, C), jnp.float32)
    # TODO(synk): the 9 shifted taps could be routed through pltpu.roll on the
    # idle XLU slot and the grid chunked over rows/channels; sliced loads kept
    # for lowering robustness (this kernel is a small fraction of total time).
    for dh in range(3):
        for dw in range(3):
            wk = w_ref[dh, dw, :].reshape(1, 1, C)
            acc = acc + x_ref[0, dh:dh + H, dw:dw + W, :] * wk
    acc = acc + b_ref[...]
    o_ref[0] = acc * _sigmoid(acc)


@jax.jit
def dwconv3x3_silu(x, w, b):
    B, H, W, C = x.shape
    xp = jnp.pad(x, ((0, 0), (1, 1), (1, 1), (0, 0)))
    return pl.pallas_call(
        _dwconv_kernel,
        grid=(B,),
        in_specs=[pl.BlockSpec((1, H + 2, W + 2, C), lambda i: (i, 0, 0, 0)),
                  pl.BlockSpec((3, 3, C), lambda i: (0, 0, 0)),
                  pl.BlockSpec((1, 1, C), lambda i: (0, 0, 0))],
        out_specs=pl.BlockSpec((1, H, W, C), lambda i: (i, 0, 0, 0)),
        out_shape=jax.ShapeDtypeStruct((B, H, W, C), jnp.float32),
        compiler_params=_CP1,
    )(xp, w, b.reshape(1, 1, C))


# ---- SS2D selective scan (mamba recurrence), fully in-kernel expansion ------
def _scan_kernel(u_ref, dt_ref, bT_ref, cT_ref, a_ref, d_ref, y_ref, h_ref, *,
                 group):
    # u_ref, dt_ref, y_ref: (Lc, d); bT_ref, cT_ref: (n, Lc)
    # a_ref: (n, d); d_ref: (1, d); h_ref: VMEM scratch (n, d), carried over L.
    @pl.when(pl.program_id(2) == 0)
    def _():
        h_ref[...] = jnp.zeros_like(h_ref)

    Lc, dch = u_ref.shape
    n = a_ref.shape[0]
    A = a_ref[...]                       # (n, d)
    Du = d_ref[...]                      # (1, d)
    bT = bT_ref[...]                     # (n, Lc)
    cT = cT_ref[...]                     # (n, Lc)
    h = h_ref[...]                       # (n, d) carry

    for g in range(Lc // group):
        t0 = g * group
        dt_g = dt_ref[t0:t0 + group, :]                      # (G, d)
        u_g = u_ref[t0:t0 + group, :]                        # (G, d)
        dt_sp = _softplus(dt_g)                              # EUP
        x_g = dt_sp * u_g                                    # (G, d)
        dA_g = jnp.exp(dt_sp[:, None, :] * A[None, :, :])    # (G, n, d), EUP
        rows = []
        for j in range(group):
            t = t0 + j
            # h update: (n,d) FMA; dBu built from (1,d) x (n,1) broadcasts.
            h = dA_g[j] * h + x_g[j:j + 1, :] * bT[:, t:t + 1]
            # C contraction on VPU + 16-sublane XLU reduce (no MXU push).
            rows.append(jnp.sum(h * cT[:, t:t + 1], axis=0, keepdims=True))
        # sublane-dense (G, d) store per group, with fused "+ D*u" epilogue.
        y_ref[t0:t0 + group, :] = jnp.concatenate(rows, axis=0) + Du * u_g

    h_ref[...] = h


@jax.jit
def selective_scan(u, dt, A, Bm, Cm, D):
    """u, dt: (B,4,L,d); A: (4,n,d); Bm, Cm: (B,4,L,n); D: (4,d) -> (B,4,L,d)."""
    Bb, K, L, d = u.shape
    n = A.shape[1]
    Lc = _choose_chunk(L)
    assert L % Lc == 0
    nL = L // Lc
    G = 8 if Lc % 8 == 0 else Lc

    # Pre-transpose B/C so per-step columns are static lane slices in-kernel:
    # (B,K,L,n) -> (B,K,nL,n,Lc).  Tiny tensors (n = 16 wide).
    def to_cols(m):
        return jnp.transpose(m.reshape(Bb, K, nL, Lc, n), (0, 1, 2, 4, 3))

    BT = to_cols(Bm)
    CT = to_cols(Cm)
    D3 = D.reshape(K, 1, d)

    return pl.pallas_call(
        functools.partial(_scan_kernel, group=G),
        grid=(Bb, K, nL),
        in_specs=[
            pl.BlockSpec((None, None, Lc, d), lambda b, k, l: (b, k, l, 0)),
            pl.BlockSpec((None, None, Lc, d), lambda b, k, l: (b, k, l, 0)),
            pl.BlockSpec((None, None, None, n, Lc),
                         lambda b, k, l: (b, k, l, 0, 0)),
            pl.BlockSpec((None, None, None, n, Lc),
                         lambda b, k, l: (b, k, l, 0, 0)),
            pl.BlockSpec((None, n, d), lambda b, k, l: (k, 0, 0)),
            pl.BlockSpec((None, 1, d), lambda b, k, l: (k, 0, 0)),
        ],
        out_specs=pl.BlockSpec((None, None, Lc, d), lambda b, k, l: (b, k, l, 0)),
        out_shape=jax.ShapeDtypeStruct((Bb, K, L, d), jnp.float32),
        scratch_shapes=[pltpu.VMEM((n, d), jnp.float32)],
        compiler_params=_CP_SCAN,
    )(u, dt, BT, CT, A, D3)


# ============================ parameters =====================================
_key0 = jax.random.PRNGKey(1234)
_cnt = itertools.count()


def _init(shape, scale=0.02):
    k = jax.random.fold_in(_key0, next(_cnt))
    return scale * jax.random.normal(k, shape, dtype=jnp.float32)


def _bf16(x):
    return x.astype(jnp.bfloat16)


def _zeros(*shape):
    return jnp.zeros(shape, jnp.float32)


def _ones(*shape):
    return jnp.ones(shape, jnp.float32)


def _make_block(dim):
    d_inner = 2 * dim
    R = int(math.ceil(dim / 16))
    n = D_STATE
    # x_proj / dt_proj folded into one per-direction projection:
    #   proj = x @ [ Wx[:, :R] @ Wdt | Wx[:, R:R+2n] ]  (+ [b_dt | 0])
    # columns: [0:d) = dt_raw, [d:d+n) = B, [d+n:d+2n) = C; padded to 128 lanes.
    ncomb = d_inner + 2 * n
    npad = ((ncomb + 127) // 128) * 128
    xdt_w, xdt_b = [], []
    for _ in range(4):
        x_proj_w = _init((d_inner, R + 2 * n))
        dt_proj_w = _init((R, d_inner), scale=R ** -0.5)
        dt_proj_b = jnp.full((d_inner,), -4.0, jnp.float32)
        wc = jnp.concatenate([x_proj_w[:, :R] @ dt_proj_w, x_proj_w[:, R:]],
                             axis=1)
        xdt_w.append(jnp.pad(wc, ((0, 0), (0, npad - ncomb))))
        xdt_b.append(jnp.pad(dt_proj_b, (0, npad - d_inner)))
    return {
        "d_inner": d_inner,
        "ln_g": _ones(dim), "ln_b": _zeros(dim),
        "in_proj_w": _bf16(_init((dim, 2 * d_inner))),
        "in_proj_b": _zeros(2 * d_inner),
        "conv_w": _init((3, 3, d_inner), scale=0.1), "conv_b": _zeros(d_inner),
        "xdt_w": _bf16(jnp.stack(xdt_w)), "xdt_b": jnp.stack(xdt_b),
        "A_log": jnp.log(jnp.tile(jnp.arange(1.0, n + 1.0, dtype=jnp.float32),
                                  (4, d_inner, 1))),
        "D": _ones(4, d_inner),
        "out_norm_g": _ones(d_inner), "out_norm_b": _zeros(d_inner),
        "out_proj_w": _bf16(_init((d_inner, dim))), "out_proj_b": _zeros(dim),
    }


def build_params():
    vssm = {}
    vssm["patch_embed"] = {
        "w": _bf16(_init((16 * IN_CH, DIMS[0]))), "b": _zeros(DIMS[0]),
        "ln_g": _ones(DIMS[0]), "ln_b": _zeros(DIMS[0]),
    }
    layers = []
    for i in range(4):
        layer = {"blocks": [_make_block(DIMS[i]) for _ in range(DEPTHS[i])]}
        if i < 3:
            layer["downsample"] = {
                "ln_g": _ones(4 * DIMS[i]), "ln_b": _zeros(4 * DIMS[i]),
                "w": _bf16(_init((4 * DIMS[i], 2 * DIMS[i]))),
                "b": _zeros(2 * DIMS[i]),
            }
        else:
            layer["downsample"] = None
        layers.append(layer)
    vssm["layers"] = layers

    dims_dec = DIMS[::-1]   # [768, 384, 192, 96]
    layers_up = []
    for i in range(4):
        layer = {"blocks": [_make_block(dims_dec[i])
                            for _ in range(DEPTHS_DEC[i])]}
        if i == 0:
            layer["upsample"] = None
        else:
            cin = 2 * dims_dec[i]
            layer["upsample"] = {
                "w": _bf16(_init((cin, 2 * cin))), "b": _zeros(2 * cin),
                "ln_g": _ones(cin // 2), "ln_b": _zeros(cin // 2),
            }
        layers_up.append(layer)
    vssm["layers_up"] = layers_up
    vssm["final_up"] = {
        "w": _bf16(_init((DIMS[0], 4 * DIMS[0]))), "b": _zeros(4 * DIMS[0]),
    }
    # final head: cn=24 feature dim zero-padded to 128 lanes (lane-dense),
    # LN params padded with zeros; conv weight (128, 128): rows >= 24 and
    # columns >= num_classes are zero, column 0 is the class logit.
    cn = DIMS[0] // 4
    kpad = 128
    npad = 128
    vssm["final_ln_g"] = jnp.pad(_ones(cn), (0, kpad - cn))
    vssm["final_ln_b"] = _zeros(kpad)
    wfc = jnp.pad(_init((cn, NUM_CLASSES)),
                  ((0, kpad - cn), (0, npad - NUM_CLASSES)))
    vssm["final_conv_w"] = _bf16(wfc)
    vssm["final_conv_b"] = _zeros(npad)

    call = sum(DIMS)
    dca = {k: [] for k in ["ln_g", "ln_b", "cq_w", "ck_w", "cv_w",
                           "sq_w", "sk_w", "sv_w", "so_w", "so_b",
                           "fuse_w", "fuse_b"]}
    for C in DIMS:
        dca["ln_g"].append(_ones(C))
        dca["ln_b"].append(_zeros(C))
        dca["cq_w"].append(_init((C, C)))
        dca["ck_w"].append(_init((call, C)))
        dca["cv_w"].append(_init((call, C)))
        dca["sq_w"].append(_init((C, C)))
        dca["sk_w"].append(_init((call, C)))
        dca["sv_w"].append(_init((call, C)))
        dca["so_w"].append(_init((C, C)))
        dca["so_b"].append(_zeros(C))
        dca["fuse_w"].append(_bf16(_init((C, C))))
        dca["fuse_b"].append(_zeros(C))
    return {"vssm": vssm, "dca": dca}


# ============================ model forward ==================================
def ss2d_forward(x, p):
    """Pre-LN -> in_proj -> dwconv+SiLU -> 4-dir selective scan ->
    out_norm*gate -> out_proj -> + residual (LN / gate fused into matmuls)."""
    B, H, W, C = x.shape
    d = p["d_inner"]
    n = D_STATE
    x2 = x.reshape(-1, C)

    xz = ln_matmul(x2, p["ln_g"], p["ln_b"], p["in_proj_w"], p["in_proj_b"])
    xz = xz.reshape(B, H, W, 2 * d)
    xc, z = xz[..., :d], xz[..., d:]
    xc = dwconv3x3_silu(xc, p["conv_w"], p["conv_b"])

    L = H * W
    x_hw = xc.reshape(B, L, d)
    x_wh = jnp.transpose(xc, (0, 2, 1, 3)).reshape(B, L, d)
    xs = jnp.stack([x_hw, x_wh,
                    jnp.flip(x_hw, axis=1), jnp.flip(x_wh, axis=1)], axis=1)

    # folded x_proj + dt_proj, all 4 directions in one batched matmul
    xdirs = jnp.transpose(xs, (1, 0, 2, 3)).reshape(4, B * L, d)
    proj = matmul_bias_dirs(xdirs, p["xdt_w"], p["xdt_b"])
    proj = proj.reshape(4, B, L, -1)
    dts = jnp.transpose(proj[..., :d], (1, 0, 2, 3))
    Bs = jnp.transpose(proj[..., d:d + n], (1, 0, 2, 3))
    Cs = jnp.transpose(proj[..., d + n:d + 2 * n], (1, 0, 2, 3))

    A = jnp.transpose(-jnp.exp(p["A_log"]), (0, 2, 1))     # (4, n, d)
    # dA/dBu expansion, softplus and the "+ D*u" epilogue happen in-kernel.
    ys = selective_scan(xs, dts, A, Bs, Cs, p["D"])        # (B, 4, L, d)

    y0 = ys[:, 0]
    y1 = ys[:, 1]
    y2 = jnp.flip(ys[:, 2], axis=1)
    y3 = jnp.flip(ys[:, 3], axis=1)
    y1 = jnp.transpose(y1.reshape(B, W, H, d), (0, 2, 1, 3)).reshape(B, L, d)
    y3 = jnp.transpose(y3.reshape(B, W, H, d), (0, 2, 1, 3)).reshape(B, L, d)
    ysum = (y0 + y1 + y2 + y3).reshape(-1, d)

    out = ln_gate_matmul_res(ysum, z.reshape(-1, d), x2,
                             p["out_norm_g"], p["out_norm_b"],
                             p["out_proj_w"], p["out_proj_b"])
    return out.reshape(B, H, W, C)


def vss_block(x, p):
    # DropPath is identity at inference; residual is fused inside ss2d_forward.
    return ss2d_forward(x, p)


def patch_embed(x_nchw, p):
    B, C, H, W = x_nchw.shape
    x = jnp.transpose(x_nchw, (0, 2, 3, 1))
    x = x.reshape(B, H // 4, 4, W // 4, 4, C)
    x = jnp.transpose(x, (0, 1, 3, 2, 4, 5)).reshape(B, H // 4, W // 4, 16 * C)
    y = matmul_bias(x.reshape(-1, 16 * C), p["w"], p["b"])
    y = y.reshape(B, H // 4, W // 4, -1)
    return layer_norm(y, p["ln_g"], p["ln_b"])


def patch_merge(x, p):
    B, H, W, C = x.shape
    x0 = x[:, 0::2, 0::2, :]
    x1 = x[:, 1::2, 0::2, :]
    x2 = x[:, 0::2, 1::2, :]
    x3 = x[:, 1::2, 1::2, :]
    xc = jnp.concatenate([x0, x1, x2, x3], axis=-1)
    y = ln_matmul(xc.reshape(-1, 4 * C), p["ln_g"], p["ln_b"], p["w"], p["b"])
    return y.reshape(B, H // 2, W // 2, 2 * C)


def patch_expand(x, p, scale):
    B, H, W, C = x.shape
    y = matmul_bias(x.reshape(-1, C), p["w"], p["b"]).reshape(B, H, W, scale * C)
    cn = C // scale
    y = y.reshape(B, H, W, scale, scale, cn)
    y = jnp.transpose(y, (0, 1, 3, 2, 4, 5)).reshape(B, H * scale, W * scale, cn)
    return layer_norm(y, p["ln_g"], p["ln_b"])


def _ln_jnp(x, g, b):
    mu = jnp.mean(x, axis=-1, keepdims=True)
    xc = x - mu
    var = jnp.mean(xc * xc, axis=-1, keepdims=True)
    return xc * jax.lax.rsqrt(var + 1e-5) * g + b


def _softmax_last(x):
    m = jnp.max(x, axis=-1, keepdims=True)
    e = jnp.exp(x - m)
    return e / jnp.sum(e, axis=-1, keepdims=True)


def dca_forward(feats, p):
    # TODO(synk): exact DCA (Ates et al.) internals unavailable; dual (channel +
    # spatial) cross-attention over pooled multi-scale tokens.  Token-level math
    # (T = 4 tokens) stays in plain XLA (launch-overhead dominated); the learned
    # fusion matmul runs in Pallas on the unique token rows and is then
    # broadcast back to pixels (identical math, no redundant per-pixel FLOPs).
    B = feats[0].shape[0]
    P = DCA_P
    T = P * P
    toks = []
    for i, f in enumerate(feats):
        _, H, W, C = f.shape
        t = f.reshape(B, P, H // P, P, W // P, C).mean(axis=(2, 4)).reshape(B, T, C)
        toks.append(_ln_jnp(t, p["ln_g"][i], p["ln_b"][i]))
    concat = jnp.concatenate(toks, axis=-1)

    outs = []
    for i, f in enumerate(feats):
        _, H, W, C = f.shape
        t = toks[i]
        # ---- channel cross-attention (heads = 1) ----
        q = jnp.einsum('btc,cd->btd', t, p["cq_w"][i])
        k = jnp.einsum('btc,cd->btd', concat, p["ck_w"][i])
        v = jnp.einsum('btc,cd->btd', concat, p["cv_w"][i])
        attn = _softmax_last(jnp.einsum('btc,btd->bcd', q, k) / math.sqrt(T))
        co = jnp.einsum('bcd,btd->btc', attn, v)
        t = t + co
        # ---- spatial cross-attention (multi-head) ----
        hds = SPATIAL_HEADS[i]
        dh = C // hds
        q = jnp.einsum('btc,cd->btd', t, p["sq_w"][i]).reshape(B, T, hds, dh)
        k = jnp.einsum('btc,cd->btd', concat, p["sk_w"][i]).reshape(B, T, hds, dh)
        v = jnp.einsum('btc,cd->btd', concat, p["sv_w"][i]).reshape(B, T, hds, dh)
        s = jnp.einsum('bqhd,bkhd->bhqk', q, k) / math.sqrt(dh)
        so = jnp.einsum('bhqk,bkhd->bqhd', _softmax_last(s), v).reshape(B, T, C)
        so = jnp.einsum('btc,cd->btd', so, p["so_w"][i]) + p["so_b"][i]
        t = t + so
        # ---- learned fusion on the B*T unique token rows, then un-pool ----
        fused_tok = matmul_bias(t.reshape(B * T, C), p["fuse_w"][i],
                                p["fuse_b"][i]).reshape(B, P, P, C)
        up = jnp.repeat(jnp.repeat(fused_tok, H // P, axis=1), W // P, axis=2)
        outs.append(f + up)
    return outs


def vmunet_forward(x, params):
    """x: NCHW float32 [B, 3, H, W] -> NCHW [B, num_classes, H, W] (sigmoid)."""
    if x.shape[1] == 1:
        x = jnp.tile(x, (1, 3, 1, 1))
    p = params["vssm"]

    # ---------------- encoder (VSSM forward_features) ----------------
    h = patch_embed(x, p["patch_embed"])
    skips = []
    for layer in p["layers"]:
        skips.append(h)                       # skip taken BEFORE the layer
        for blk in layer["blocks"]:
            h = vss_block(h, blk)
        if layer["downsample"] is not None:
            h = patch_merge(h, layer["downsample"])

    # ---------------- DCA on the skip features ----------------
    skips = dca_forward(list(skips), params["dca"])

    # ---------------- decoder (forward_features_up) ----------------
    # NOTE: follows original VM-UNet indexing (skip_list[-inx]); f1 is produced
    # by the DCA but not consumed by the decoder, as in the reference.
    for inx, layer in enumerate(p["layers_up"]):
        if inx > 0:
            h = h + skips[-inx]
        if layer["upsample"] is not None:
            h = patch_expand(h, layer["upsample"], scale=2)
        for blk in layer["blocks"]:
            h = vss_block(h, blk)

    # ------- final head: 4x expand, fused LN + padded 1x1 conv + sigmoid -------
    fp = p["final_up"]
    Bh, Hh, Wh, Cf = h.shape
    y = matmul_bias(h.reshape(-1, Cf), fp["w"], fp["b"]).reshape(Bh, Hh, Wh, 4 * Cf)
    cn = Cf // 4
    y = y.reshape(Bh, Hh, Wh, 4, 4, cn)
    y = jnp.transpose(y, (0, 1, 3, 2, 4, 5)).reshape(Bh, 4 * Hh, 4 * Wh, cn)
    # pad the 24-wide feature to 128 lanes (lane-dense K for the LN+conv over
    # the model's largest row count); LN stats are corrected for the true width.
    y2 = jnp.pad(y.reshape(-1, cn), ((0, 0), (0, 128 - cn)))
    out = ln_matmul(y2, p["final_ln_g"], p["final_ln_b"],
                    p["final_conv_w"], p["final_conv_b"],
                    act="sigmoid", k_true=cn)
    out = out[:, :NUM_CLASSES].reshape(Bh, 4 * Hh, 4 * Wh, NUM_CLASSES)
    return jnp.transpose(out, (0, 3, 1, 2))   # back to NCHW like PyTorch


# ================================ main =======================================
if __name__ == "__main__":
    params = build_params()
    key = jax.random.PRNGKey(0)
    # B=2, 3 channels, 64x64 spatial (smallest size supporting the 4x patch
    # embed, 3 merges down to 2x2, and the DCA 2x2 token pooling).
    x = jax.random.normal(key, (2, 3, 64, 64), dtype=jnp.float32)
    out = vmunet_forward(x, params)
    out = jax.block_until_ready(out)
    assert out.shape == (2, NUM_CLASSES, 64, 64), out.shape
    assert bool(jnp.all(jnp.isfinite(out)))
    print("KERNEL_OK")
</pallas_src>

<mosaic_0001>
module attributes {stable_mosaic.version = 11 : i64} {
  func.func @_mm_kernel(%arg0: i32, %arg1: memref<128x48xf32, #tpu.memory_space<vmem>>, %arg2: memref<48x96xbf16, #tpu.memory_space<vmem>>, %arg3: memref<1x96xf32, #tpu.memory_space<vmem>>, %arg4: memref<128x96xf32, #tpu.memory_space<vmem>>) attributes {dimension_semantics = [#tpu.dimension_semantics<parallel>], iteration_bounds = array<i64: 4>, scalar_prefetch = 0 : i64, scratch_operands = 0 : i64, tpu.core_type = #tpu.core_type<tc>, window_params = [{transform_indices = @transform_0, window_bounds = array<i64: 128, 48>}, {pipeline_mode = #tpu.pipeline_mode<synchronous>, transform_indices = @transform_1, window_bounds = array<i64: 48, 96>}, {pipeline_mode = #tpu.pipeline_mode<synchronous>, transform_indices = @transform_2, window_bounds = array<i64: 1, 96>}, {transform_indices = @transform_3, window_bounds = array<i64: 128, 96>}]} {
    %c0 = arith.constant 0 : index
    %c0_0 = arith.constant 0 : index
    %0 = vector.load %arg1[%c0, %c0_0] : memref<128x48xf32, #tpu.memory_space<vmem>>, vector<128x48xf32>
    %1 = arith.truncf %0 : vector<128x48xf32> to vector<128x48xbf16>
    %c0_1 = arith.constant 0 : index
    %c0_2 = arith.constant 0 : index
    %2 = vector.load %arg2[%c0_1, %c0_2] : memref<48x96xbf16, #tpu.memory_space<vmem>>, vector<48x96xbf16>
    %cst = arith.constant dense<0.000000e+00> : vector<128x96xf32>
    %3 = tpu.matmul %1, %2, %cst {dimension_numbers = #tpu.dot_dimension_numbers<[1], [0], [0], [1], [0, 0, 1, 1], [], []>} : vector<128x48xbf16>, vector<48x96xbf16>, vector<128x96xf32> -> vector<128x96xf32>
    %c0_3 = arith.constant 0 : index
    %c0_4 = arith.constant 0 : index
    %4 = vector.load %arg3[%c0_3, %c0_4] : memref<1x96xf32, #tpu.memory_space<vmem>>, vector<1x96xf32>
    %5 = vector.broadcast %4 : vector<1x96xf32> to vector<128x96xf32>
    %6 = arith.addf %3, %5 : vector<128x96xf32>
    %c0_5 = arith.constant 0 : index
    %c0_6 = arith.constant 0 : index
    %7 = vector.load %arg4[%c0_5, %c0_6] : memref<128x96xf32, #tpu.memory_space<vmem>>, vector<128x96xf32>
    tpu.vector_store %arg4[%c0_5, %c0_6], %6 {strides = array<i32>} : memref<128x96xf32, #tpu.memory_space<vmem>>, vector<128x96xf32>,
    return
  }
  func.func @transform_0(%arg0: i32) -> (i32, i32) {
    %c0_i32 = arith.constant 0 : i32
    %c0_i32_0 = arith.constant 0 : i32
    return %arg0, %c0_i32 : i32, i32
  }
  func.func @transform_1(%arg0: i32) -> (i32, i32) {
    %c0_i32 = arith.constant 0 : i32
    %c0_i32_0 = arith.constant 0 : i32
    %c0_i32_1 = arith.constant 0 : i32
    return %c0_i32, %c0_i32_0 : i32, i32
  }
  func.func @transform_2(%arg0: i32) -> (i32, i32) {
    %c0_i32 = arith.constant 0 : i32
    %c0_i32_0 = arith.constant 0 : i32
    %c0_i32_1 = arith.constant 0 : i32
    return %c0_i32, %c0_i32_0 : i32, i32
  }
  func.func @transform_3(%arg0: i32) -> (i32, i32) {
    %c0_i32 = arith.constant 0 : i32
    %c0_i32_0 = arith.constant 0 : i32
    return %arg0, %c0_i32 : i32, i32
  }
}

</mosaic_0001>

<llo_original>
// kernel: matmul_bias.1
$region0: #{matmul_bias.1}
  #allocation0 [shape = 'u32[]', space=smem, size = 0x4, offset = 0x4, fixed_abs, tag = 'smem constant byte address 0x4 - core index']
  #allocation1 [shape = 'u32[144,128]{1,0:T(1,128)}', space=vmem, size = 0x12000, scoped, tag = 'internal scratch']
  %s0 = inlined_call_operand.vmem [shape: f32[512,48], index: 0, kind: input, shape index: {}]
  %s1 = inlined_call_operand.vmem [shape: bf16[48,96], index: 1, kind: input, shape index: {}]
  %s2 = inlined_call_operand.vmem [shape: f32[1,96], index: 2, kind: input, shape index: {}]
  %s3 = inlined_call_operand.vmem [shape: f32[512,96], index: 3, kind: output, shape index: {}]
  %s4 = sld [smem:[#allocation0]]
  $region45: #{matmul_bias.1} parent=0
    _
  %s6 = ssub.s32 1, %s4
  %s7 = scalar_select 0, %s6, %s4
  loop: start=0, step=1, limit=6
  $region2: #{matmul_bias.1} parent=0 // loop_pre_header
    _
  $region3: #{matmul_bias.1} parent=0 // loop_header
    %s9 = sphi 0, %s13
    %p10 = scmp.ge.s32.totalorder %s9, 6
    %s19 = sphi 0, %s21
    %s22 = sphi 0, %s19
    %s23 = sphi 0, %s22
    %s39 = sphi 0, %s23
    %s43 = sphi 0, %s43
    %s45 = sphi 0, %s43
    %s46 = sphi 0, %s45
    %s60 = sphi 0, %s46
    %s64 = sphi 0, %s64
    %s66 = sphi 0, %s64
    %s67 = sphi 0, %s66
    %s81 = sphi 0, %s67
    %s87 = sphi 0, %s89
    %s90 = sphi 0, %s87
    %s91 = sphi 0, %s90
    %s107 = sphi 0, %s91
  $region4: #{matmul_bias.1} parent=0 // loop_header_branch
    %12 = sbr.rel (%p10) target = $region8
  $region5: #{matmul_bias.1} parent=0 // loop_body
    %s14 = ssub.s32 %s9, 1
    %s15 = ssub.s32 %s9, 2
    %s16 = sadd.s32 %s9, 1
    %s17 = ssub.s32 %s9, %s16
    %p18 = scmp.eq.s32.totalorder %s17, 0
    %s20 = sadd.s32 %s19, 1
    %s21 = scalar_select %p18, %s19, %s20
    %p24 = pneg %p18
    %p25 = scmp.eq.s32.totalorder %s9, 3
    %p26 = por %p24, %p25
    %p27 = scmp.ne.s32.totalorder %s19, %s22
    %p28 = scmp.eq.s32.totalorder %s9, 0
    %p29 = por %p27, %p28
    %p30 = scmp.ne.s32.totalorder %s19, %s22
    %p31 = scmp.eq.s32.totalorder %s14, 3
    %p32 = por %p30, %p31
    %p33 = scmp.ne.s32.totalorder %s22, %s23
    %p34 = scmp.eq.s32.totalorder %s14, 0
    %p35 = por %p33, %p34
    %p36 = scmp.ne.s32.totalorder %s22, %s23
    %p37 = scmp.eq.s32.totalorder %s15, 3
    %p38 = por %p36, %p37
    %p40 = scmp.ne.s32.totalorder %s23, %s39
    %p41 = scmp.eq.s32.totalorder %s15, 0
    %p42 = por %p40, %p41
    %s44 = sadd.s32 %s43, 1
    %p47 = scmp.eq.s32.totalorder %s9, 3
    %p48 = scmp.ne.s32.totalorder %s43, %s45
    %p49 = scmp.eq.s32.totalorder %s9, 0
    %p50 = por %p48, %p49
    %p51 = scmp.ne.s32.totalorder %s43, %s45
    %p52 = scmp.eq.s32.totalorder %s14, 3
    %p53 = por %p51, %p52
    %p54 = scmp.ne.s32.totalorder %s45, %s46
    %p55 = scmp.eq.s32.totalorder %s14, 0
    %p56 = por %p54, %p55
    %p57 = scmp.ne.s32.totalorder %s45, %s46
    %p58 = scmp.eq.s32.totalorder %s15, 3
    %p59 = por %p57, %p58
    %p61 = scmp.ne.s32.totalorder %s46, %s60
    %p62 = scmp.eq.s32.totalorder %s15, 0
    %p63 = por %p61, %p62
    %s65 = sadd.s32 %s64, 1
    %p68 = scmp.eq.s32.totalorder %s9, 3
    %p69 = scmp.ne.s32.totalorder %s64, %s66
    %p70 = scmp.eq.s32.totalorder %s9, 0
    %p71 = por %p69, %p70
    %p72 = scmp.ne.s32.totalorder %s64, %s66
    %p73 = scmp.eq.s32.totalorder %s14, 3
    %p74 = por %p72, %p73
    %p75 = scmp.ne.s32.totalorder %s66, %s67
    %p76 = scmp.eq.s32.totalorder %s14, 0
    %p77 = por %p75, %p76
    %p78 = scmp.ne.s32.totalorder %s66, %s67
    %p79 = scmp.eq.s32.totalorder %s15, 3
    %p80 = por %p78, %p79
    %p82 = scmp.ne.s32.totalorder %s67, %s81
    %p83 = scmp.eq.s32.totalorder %s15, 0
    %p84 = por %p82, %p83
    %s85 = ssub.s32 %s9, %s16
    %p86 = scmp.eq.s32.totalorder %s85, 0
    %s88 = sadd.s32 %s87, 1
    %s89 = scalar_select %p86, %s87, %s88
    %p92 = pneg %p86
    %p93 = scmp.eq.s32.totalorder %s9, 3
    %p94 = por %p92, %p93
    %p95 = scmp.ne.s32.totalorder %s87, %s90
    %p96 = scmp.eq.s32.totalorder %s9, 0
    %p97 = por %p95, %p96
    %p98 = scmp.ne.s32.totalorder %s87, %s90
    %p99 = scmp.eq.s32.totalorder %s14, 3
    %p100 = por %p98, %p99
    %p101 = scmp.ne.s32.totalorder %s90, %s91
    %p102 = scmp.eq.s32.totalorder %s14, 0
    %p103 = por %p101, %p102
    %p104 = scmp.ne.s32.totalorder %s90, %s91
    %p105 = scmp.eq.s32.totalorder %s15, 3
    %p106 = por %p104, %p105
    %p108 = scmp.ne.s32.totalorder %s91, %s107
    %p109 = scmp.eq.s32.totalorder %s15, 0
    %p110 = por %p108, %p109
    %p111 = scmp.le.s32.totalorder 1, %s9
    %p112 = scmp.lt.s32.totalorder %s9, 5
    %p113 = pnand %p111, %p112
    %p114 = pneg %p113
    // Predicated region
    $region9: #{matmul_bias.1} parent=5 // pred_check
      _
    $region10: #{matmul_bias.1} parent=5 // pred_check_branch
      %116 = sbr.rel (%p113) target = $region12
    $region11: #{matmul_bias.1} parent=5 // pred_region
      %s117 = ssub.s32 %s9, 1
      // Predicated region
      $region13: #{matmul_bias.1} parent=11 // pred_check
        %p118 = pneg %p56
      $region14: #{matmul_bias.1} parent=11 // pred_check_branch
        %120 = sbr.rel (%p118) target = $region16
      $region15: #{matmul_bias.1} parent=11 // pred_region
        _
      $region16: #{matmul_bias.1} parent=11 // pred_fallthru
        _
      // Predicated region
      $region17: #{matmul_bias.1} parent=11 // pred_check
        %p121 = pneg %p77
      $region18: #{matmul_bias.1} parent=11 // pred_check_branch
        %123 = sbr.rel (%p121) target = $region20
      $region19: #{matmul_bias.1} parent=11 // pred_region
        _
      $region20: #{matmul_bias.1} parent=11 // pred_fallthru
        _
    $region12: #{matmul_bias.1} parent=5 // pred_fallthru
      _
    %p124 = scmp.lt.s32.totalorder %s9, 4
    // Predicated region
    $region21: #{matmul_bias.1} parent=5 // pred_check
      %p125 = pneg %p124
    $region22: #{matmul_bias.1} parent=5 // pred_check_branch
      %127 = sbr.rel (%p125) target = $region24
    $region23: #{matmul_bias.1} parent=5 // pred_region
      // Predicated region
      $region25: #{matmul_bias.1} parent=23 // pred_check
        %p128 = pneg %p29
      $region26: #{matmul_bias.1} parent=23 // pred_check_branch
        %130 = sbr.rel (%p128) target = $region28
      $region27: #{matmul_bias.1} parent=23 // pred_region
        %s131 = smul.u32 16, %s9
        %p132 = scmp.lt.s32.totalorder %s131, 63
        %s133 = scalar_select %p132, %s131, 63
        %s134 = smul.addr %s133, 8
        %s135 = scalar_lea.vmem %s0, %s134
        %s136 = smul.u32 16, %s9
      $region28: #{matmul_bias.1} parent=23 // pred_fallthru
        _
    $region24: #{matmul_bias.1} parent=5 // pred_fallthru
      _
    %p137 = scmp.le.s32.totalorder 1, %s9
    %p138 = scmp.lt.s32.totalorder %s9, 5
    %p139 = pnand %p137, %p138
    %p140 = pneg %p139
    // Predicated region
    $region29: #{matmul_bias.1} parent=5 // pred_check
      _
    $region30: #{matmul_bias.1} parent=5 // pred_check_branch
      %142 = sbr.rel (%p139) target = $region32
    $region31: #{matmul_bias.1} parent=5 // pred_region
      %s143 = ssub.s32 %s9, 1
      %s144 = smul.u32 16, %s14
      %p145 = scmp.lt.s32.totalorder %s144, 63
      %s146 = scalar_select %p145, %s144, 63
      %s147 = smul.addr %s146, 8
      %s148 = scalar_lea.vmem %s0, %s147
      %p149 = pneg %p35
      %p150 = pneg %p32
      %p151 = pneg %p56
      %p152 = pneg %p53
      %p153 = pneg %p77
      %p154 = pneg %p74
      %p155 = pneg %p103
      %p156 = pneg %p100
      %s157 = smul.u32 16, %s14
      %p158 = scmp.lt.s32.totalorder %s157, 63
      %s159 = scalar_select %p158, %s157, 63
      %s160 = smul.addr %s159, 8
      %s161 = scalar_lea.vmem %s3, %s160
      %s162 = smul.u32 16, %s14
      %p163 = scmp.lt.s32.totalorder %s162, 63
      %s164 = scalar_select %p163, %s162, 63
      %s165 = smul.addr %s164, 8
      %s166 = scalar_lea.vmem %s0, %s165
      %s167 = smul.u32 16, %s14
      %s168 = smul.u32 16, %s14
      %p169 = scmp.lt.s32.totalorder %s168, 63
      %s170 = scalar_select %p169, %s168, 63
      %s171 = smul.addr %s170, 8
      %s172 = scalar_lea.vmem %s3, %s171
      %s173 = smul.u32 16, %s14
      %v175 = vld [vmem:[%s166] sm:$0xff]
      %v176 = vld [vmem:[%s166 + $0x8] sm:$0xff]
      %v177 = vld [vmem:[%s166 + $0x10] sm:$0xff]
      %v178 = vld [vmem:[%s166 + $0x18] sm:$0xff]
      %v179 = vld [vmem:[%s166 + $0x20] sm:$0xff]
      %v180 = vld [vmem:[%s166 + $0x28] sm:$0xff]
      %v181 = vld [vmem:[%s166 + $0x30] sm:$0xff]
      %v182 = vld [vmem:[%s166 + $0x38] sm:$0xff]
      %v183 = vld [vmem:[%s166 + $0x40] sm:$0xff]
      %v184 = vld [vmem:[%s166 + $0x48] sm:$0xff]
      %v185 = vld [vmem:[%s166 + $0x50] sm:$0xff]
      %v186 = vld [vmem:[%s166 + $0x58] sm:$0xff]
      %v187 = vld [vmem:[%s166 + $0x60] sm:$0xff]
      %v188 = vld [vmem:[%s166 + $0x68] sm:$0xff]
      %v189 = vld [vmem:[%s166 + $0x70] sm:$0xff]
      %v190 = vld [vmem:[%s166 + $0x78] sm:$0xff]
      %v191 = vpack.c.bf16 %v176, %v175
      %v192 = vpack.c.bf16 %v178, %v177
      %v193 = vpack.c.bf16 %v180, %v179
      %v194 = vpack.c.bf16 %v182, %v181
      %v195 = vpack.c.bf16 %v184, %v183
      %v196 = vpack.c.bf16 %v186, %v185
      %v197 = vpack.c.bf16 %v188, %v187
      %v198 = vpack.c.bf16 %v190, %v189
      %v199 = vld [vmem:[%s1] sm:$0xf]
      %v200 = vld [vmem:[%s1 + $0x4] sm:$0xf]
      %v201 = vld [vmem:[%s1 + $0x8] sm:$0xf]
      %v202 = vld [vmem:[%s1 + $0xc] sm:$0xf]
      %v203 = vld [vmem:[%s1 + $0x10] sm:$0xf]
      %v204 = vld [vmem:[%s1 + $0x14] sm:$0xf]
      %v205 = vld [vmem:[%s2] sm:$0x1]
      %v207 = vlaneseq
      %v208 = vshrl.u32 %v207, 7
      %v209 = vsub.s32 0, %v208
      %v210 = vrot.slane %v205, %v209
      %v218 = vunpack.c.l.b16 %v199
      %v219 = vunpack.c.l.b16 %v200
      %v220 = vunpack.c.l.b16 %v201
      %v221 = vunpack.c.l.b16 %v202
      %v222 = vunpack.c.l.b16 %v203
      %v223 = vunpack.c.l.b16 %v204
      %v224 = vpack.c.b16 %v219, %v218
      %v225 = vpack.c.b16 %v221, %v220
      %v226 = vpack.c.b16 %v223, %v222
      %vm230 = vcmask 392192
      %v232 = vsel %vm230, %v191, 0
      %v235 = vsel %vm230, %v192, 0
      %v238 = vsel %vm230, %v193, 0
      %v241 = vsel %vm230, %v194, 0
      %v244 = vsel %vm230, %v195, 0
      %v247 = vsel %vm230, %v196, 0
      %v250 = vsel %vm230, %v197, 0
      %v253 = vsel %vm230, %v198, 0
      %255 = vmatprep.subr.bf16.mxu0 0
      %256 = vmatpush1.bf16.msra.mxu0 0
      %257 = vmatprep.subr.bf16.mxu0 0
      %258 = vmatpush1.bf16.msra.mxu0 0
      %259 = vmatprep.subr.bf16.mxu0 0
      %260 = vmatpush1.bf16.msra.mxu0 0
      %261 = vmatprep.subr.bf16.mxu0 0
      %262 = vmatpush1.bf16.msra.mxu0 0
      %263 = vmatprep.subr.bf16.mxu0 0
      %264 = vmatpush1.bf16.msra.mxu0 0
      %265 = vmatprep.subr.bf16.mxu0 0
      %266 = vmatpush1.bf16.msra.mxu0 %v226
      %267 = vmatprep.subr.bf16.mxu0 0
      %268 = vmatpush1.bf16.msra.mxu0 %v225
      %269 = vmatprep.subr.bf16.mxu0 0
      %270 = vmatpush1.bf16.msra.mxu0 %v224
      %271 = vmatprep.subr.bf16.mxu0 0
      %272 = vmatpush2.bf16.msra.mxu0 0
      %273 = vmatprep.subr.bf16.mxu0 0
      %274 = vmatpush2.bf16.msra.mxu0 0
      %275 = vmatprep.subr.bf16.mxu0 0
      %276 = vmatpush2.bf16.msra.mxu0 0
      %277 = vmatprep.subr.bf16.mxu0 0
      %278 = vmatpush2.bf16.msra.mxu0 0
      %279 = vmatprep.subr.bf16.mxu0 0
      %280 = vmatpush2.bf16.msra.mxu0 0
      %281 = vmatprep.subr.bf16.mxu0 0
      %282 = vmatpush2.bf16.msra.mxu0 0
      %283 = vmatprep.subr.bf16.mxu0 0
      %284 = vmatpush2.bf16.msra.mxu0 0
      %285 = vmatprep.subr.bf16.mxu0 0
      %286 = vmatpush2.bf16.msra.mxu0 0
      %287 = vmatprep.mubr.bf16.mxu0 0
      %288 = vmatmul.mubr.bf16.gmra.mxu0 %v232
      %v289 = vpop.f32.mrf.mxu0
      %v290 = vadd.f32 %v210, %v289
      %v291 = vpop.f32.mrf.mxu0
      %v292 = vpop.f32.mrf.mxu0
      %v293 = vadd.f32 %v210, %v292
      %v294 = vpop.f32.mrf.mxu0
      %295 = vmatprep.mubr.bf16.mxu0 0
      %296 = vmatmul.mubr.bf16.gmra.mxu0 %v235
      %v297 = vpop.f32.mrf.mxu0
      %v298 = vadd.f32 %v210, %v297
      %v299 = vpop.f32.mrf.mxu0
      %v300 = vpop.f32.mrf.mxu0
      %v301 = vadd.f32 %v210, %v300
      %v302 = vpop.f32.mrf.mxu0
      %303 = vmatprep.mubr.bf16.mxu0 0
      %304 = vmatmul.mubr.bf16.gmra.mxu0 %v238
      %v305 = vpop.f32.mrf.mxu0
      %v306 = vadd.f32 %v210, %v305
      %v307 = vpop.f32.mrf.mxu0
      %v308 = vpop.f32.mrf.mxu0
      %v309 = vadd.f32 %v210, %v308
      %v310 = vpop.f32.mrf.mxu0
      %311 = vmatprep.mubr.bf16.mxu0 0
      %312 = vmatmul.mubr.bf16.gmra.mxu0 %v241
      %v313 = vpop.f32.mrf.mxu0
      %v314 = vadd.f32 %v210, %v313
      %v315 = vpop.f32.mrf.mxu0
      %v316 = vpop.f32.mrf.mxu0
      %v317 = vadd.f32 %v210, %v316
      %v318 = vpop.f32.mrf.mxu0
      %319 = vmatprep.mubr.bf16.mxu0 0
      %320 = vmatmul.mubr.bf16.gmra.mxu0 %v244
      %v321 = vpop.f32.mrf.mxu0
      %v322 = vadd.f32 %v210, %v321
      %v323 = vpop.f32.mrf.mxu0
      %v324 = vpop.f32.mrf.mxu0
      %v325 = vadd.f32 %v210, %v324
      %v326 = vpop.f32.mrf.mxu0
      %327 = vmatprep.mubr.bf16.mxu0 0
      %328 = vmatmul.mubr.bf16.gmra.mxu0 %v247
      %v329 = vpop.f32.mrf.mxu0
      %v330 = vadd.f32 %v210, %v329
      %v331 = vpop.f32.mrf.mxu0
      %v332 = vpop.f32.mrf.mxu0
      %v333 = vadd.f32 %v210, %v332
      %v334 = vpop.f32.mrf.mxu0
      %335 = vmatprep.mubr.bf16.mxu0 0
      %336 = vmatmul.mubr.bf16.gmra.mxu0 %v250
      %v337 = vpop.f32.mrf.mxu0
      %v338 = vadd.f32 %v210, %v337
      %v339 = vpop.f32.mrf.mxu0
      %v340 = vpop.f32.mrf.mxu0
      %v341 = vadd.f32 %v210, %v340
      %v342 = vpop.f32.mrf.mxu0
      %343 = vmatprep.mubr.bf16.mxu0 0
      %344 = vmatmul.mubr.bf16.gmra.mxu0 %v253
      %v345 = vpop.f32.mrf.mxu0
      %v346 = vadd.f32 %v210, %v345
      %v347 = vpop.f32.mrf.mxu0
      %v348 = vpop.f32.mrf.mxu0
      %v349 = vadd.f32 %v210, %v348
      %v350 = vpop.f32.mrf.mxu0
      %351 = vdwg.mxu0
      %vm352 = vcmask 785408
      %353 = vst.msk [vmem:[%s172] sm:$0xff] %vm352, %v290
      %354 = vst.msk [vmem:[%s172 + $0x8] sm:$0xff] %vm352, %v293
      %355 = vst.msk [vmem:[%s172 + $0x10] sm:$0xff] %vm352, %v298
      %356 = vst.msk [vmem:[%s172 + $0x18] sm:$0xff] %vm352, %v301
      %357 = vst.msk [vmem:[%s172 + $0x20] sm:$0xff] %vm352, %v306
      %358 = vst.msk [vmem:[%s172 + $0x28] sm:$0xff] %vm352, %v309
      %359 = vst.msk [vmem:[%s172 + $0x30] sm:$0xff] %vm352, %v314
      %360 = vst.msk [vmem:[%s172 + $0x38] sm:$0xff] %vm352, %v317
      %361 = vst.msk [vmem:[%s172 + $0x40] sm:$0xff] %vm352, %v322
      %362 = vst.msk [vmem:[%s172 + $0x48] sm:$0xff] %vm352, %v325
      %363 = vst.msk [vmem:[%s172 + $0x50] sm:$0xff] %vm352, %v330
      %364 = vst.msk [vmem:[%s172 + $0x58] sm:$0xff] %vm352, %v333
      %365 = vst.msk [vmem:[%s172 + $0x60] sm:$0xff] %vm352, %v338
      %366 = vst.msk [vmem:[%s172 + $0x68] sm:$0xff] %vm352, %v341
      %367 = vst.msk [vmem:[%s172 + $0x70] sm:$0xff] %vm352, %v346
      %368 = vst.msk [vmem:[%s172 + $0x78] sm:$0xff] %vm352, %v349
      %s369 = smul.u32 16, %s14
      %p370 = scmp.lt.s32.totalorder %s369, 63
      %s371 = scalar_select %p370, %s369, 63
      %s372 = smul.addr %s371, 8
      %s373 = scalar_lea.vmem %s3, %s372
      // Predicated region
      $region33: #{matmul_bias.1} parent=31 // pred_check
        %p374 = pneg %p100
      $region34: #{matmul_bias.1} parent=31 // pred_check_branch
        %376 = sbr.rel (%p374) target = $region36
      $region35: #{matmul_bias.1} parent=31 // pred_region
        %s377 = smul.u32 16, %s14
      $region36: #{matmul_bias.1} parent=31 // pred_fallthru
        _
    $region32: #{matmul_bias.1} parent=5 // pred_fallthru
      _
    %p378 = scmp.le.s32.totalorder 2, %s9
    // Predicated region
    $region37: #{matmul_bias.1} parent=5 // pred_check
      %p379 = pneg %p378
    $region38: #{matmul_bias.1} parent=5 // pred_check_branch
      %381 = sbr.rel (%p379) target = $region40
    $region39: #{matmul_bias.1} parent=5 // pred_region
      %s382 = ssub.s32 %s9, 2
      // Predicated region
      $region41: #{matmul_bias.1} parent=39 // pred_check
        %p383 = pneg %p106
      $region42: #{matmul_bias.1} parent=39 // pred_check_branch
        %385 = sbr.rel (%p383) target = $region44
      $region43: #{matmul_bias.1} parent=39 // pred_region
        %s386 = smul.u32 16, %s15
        %p387 = scmp.lt.s32.totalorder %s386, 63
        %s388 = scalar_select %p387, %s386, 63
        %s389 = smul.addr %s388, 8
        %s390 = scalar_lea.vmem %s3, %s389
      $region44: #{matmul_bias.1} parent=39 // pred_fallthru
        _
    $region40: #{matmul_bias.1} parent=5 // pred_fallthru
      _
  $region6: #{matmul_bias.1} parent=0 // loop_footer
    %s13 = sadd.s32 1, %s9
  $region7: #{matmul_bias.1} parent=0 // loop_footer_branch
    %8 = sbr.rel target = $region3
  $region8: #{matmul_bias.1} parent=0 // loop_exit
    _

</llo_original>
